<compile_context>
chip_gen: v6e
topology: v6e:2x2x1
jax: 0.10.0
libtpu: 0.0.40
codegen_flags: <defaults>
</compile_context>

<pallas_src>
import jax
import jax.numpy as jnp
from jax.experimental import pallas as pl
from jax.experimental.pallas import tpu as pltpu


def _token_selector_kernel(x_ref, wd_ref, o_ref):
    # x_ref : (tm, H) row tile of hidden states, native dtype (no upcast)
    # wd_ref: (H, 1)  classifier weight difference  w[class1] - w[class0]
    # o_ref : (tm, 2) f32 log-probabilities [log p0, log p1]
    d = jnp.dot(x_ref[...], wd_ref[...],
                preferred_element_type=jnp.float32)          # (tm, 1), f32 acc

    # stable softplus(d) = max(d, 0) + log1p(exp(-|d|))
    sp = jnp.maximum(d, 0.0) + jnp.log1p(jnp.exp(-jnp.abs(d)))
    logp0 = -sp        # = -softplus(d)   = log_softmax class 0
    logp1 = d - sp     # = -softplus(-d)  = log_softmax class 1

    o_ref[...] = jnp.concatenate([logp0, logp1], axis=-1).astype(o_ref.dtype)


def _round_up(x, m):
    return ((x + m - 1) // m) * m


def _pick_tm(rows, H, dtype):
    """Row-tile size: keep the double-buffered x stream ~8 MiB so it fits the
    default scoped VMEM on every generation (v5e 16 MiB, v6e 32 MiB,
    v7x 32 MiB of 64 MiB physical)."""
    bytes_per = jnp.dtype(dtype).itemsize
    budget = 8 * 1024 * 1024
    tm = budget // (2 * H * bytes_per)
    tm = max(16, min(2048, int(tm)))
    tm = (tm // 16) * 16                 # multiple of 16: ok for f32 and bf16
    return min(tm, _round_up(rows, 16))  # don't exceed (padded) row count


def linear_token_selector(hidden_states, weight, *, tm=None):
    """hidden_states: (B, S, H); weight: (2, H) (PyTorch nn.Linear layout)."""
    B, S, H = hidden_states.shape
    rows = B * S
    x2d = hidden_states.reshape(rows, H)

    # 2-class log_softmax only needs the logit difference; precompute in f32
    # then cast to the activation dtype so the MXU runs at native width.
    w_diff = (weight[1].astype(jnp.float32) - weight[0].astype(jnp.float32))
    w_diff = w_diff.astype(hidden_states.dtype).reshape(H, 1)

    if tm is None:
        tm = _pick_tm(rows, H, hidden_states.dtype)
    grid = (pl.cdiv(rows, tm),)          # remainder tile handled by masking

    out2d = pl.pallas_call(
        _token_selector_kernel,
        out_shape=jax.ShapeDtypeStruct((rows, 2), jnp.float32),
        grid_spec=pltpu.PrefetchScalarGridSpec(
            num_scalar_prefetch=0,
            grid=grid,
            in_specs=[
                pl.BlockSpec((tm, H), lambda i: (i, 0)),   # streamed x tiles
                pl.BlockSpec((H, 1), lambda i: (0, 0)),    # resident weight diff
            ],
            out_specs=pl.BlockSpec((tm, 2), lambda i: (i, 0)),
        ),
        compiler_params=pltpu.CompilerParams(
            dimension_semantics=("parallel",),   # shards rows across v7x TCs
        ),
    )(x2d, w_diff)

    return out2d.reshape(B, S, 2)


def _reference(hidden_states, weight):
    logits = jnp.einsum("bsh,ch->bsc", hidden_states, weight)
    return jax.nn.log_softmax(logits, axis=2)


if __name__ == "__main__":
    key = jax.random.PRNGKey(0)
    k_x, k_w, k_x2 = jax.random.split(key, 3)

    B, S, H = 2, 8, 32  # small embedding_size stand-in for 768

    # "encoder output[0]" hidden states
    hidden = jax.random.normal(k_x, (B, S, H), dtype=jnp.float32)

    # deterministic classifier weight init (PyTorch Linear: U(-1/sqrt(H), 1/sqrt(H)))
    bound = 1.0 / jnp.sqrt(jnp.float32(H))
    weight = jax.random.uniform(k_w, (2, H), minval=-bound, maxval=bound,
                                dtype=jnp.float32)

    out = linear_token_selector(hidden, weight)
    out = jax.block_until_ready(out)
    ref = _reference(hidden, weight)
    assert out.shape == (B, S, 2)
    assert jnp.allclose(out, ref, atol=1e-5, rtol=1e-5), "mismatch vs reference"

    # second check: row count not a multiple of the tile -> exercises the
    # cdiv grid + masked boundary tile path (no wrapper-side padding).
    S2 = 9
    hidden2 = jax.random.normal(k_x2, (B, S2, H), dtype=jnp.float32)
    out2 = jax.block_until_ready(linear_token_selector(hidden2, weight))
    ref2 = _reference(hidden2, weight)
    assert out2.shape == (B, S2, 2)
    assert jnp.allclose(out2, ref2, atol=1e-5, rtol=1e-5), "mismatch (remainder tile)"

    print("KERNEL_OK")
</pallas_src>

<mosaic_0001>
module attributes {stable_mosaic.version = 11 : i64} {
  func.func @_token_selector_kernel(%arg0: i32, %arg1: memref<16x32xf32, #tpu.memory_space<vmem>>, %arg2: memref<32x1xf32, #tpu.memory_space<vmem>>, %arg3: memref<16x2xf32, #tpu.memory_space<vmem>>) attributes {dimension_semantics = [#tpu.dimension_semantics<parallel>], iteration_bounds = array<i64: 1>, scalar_prefetch = 0 : i64, scratch_operands = 0 : i64, tpu.core_type = #tpu.core_type<tc>, window_params = [{transform_indices = @transform_0, window_bounds = array<i64: 16, 32>}, {pipeline_mode = #tpu.pipeline_mode<synchronous>, transform_indices = @transform_1, window_bounds = array<i64: 32, 1>}, {transform_indices = @transform_2, window_bounds = array<i64: 16, 2>}]} {
    %c0 = arith.constant 0 : index
    %c0_0 = arith.constant 0 : index
    %0 = vector.load %arg1[%c0, %c0_0] : memref<16x32xf32, #tpu.memory_space<vmem>>, vector<16x32xf32>
    %c0_1 = arith.constant 0 : index
    %c0_2 = arith.constant 0 : index
    %1 = vector.load %arg2[%c0_1, %c0_2] : memref<32x1xf32, #tpu.memory_space<vmem>>, vector<32x1xf32>
    %cst = arith.constant dense<0.000000e+00> : vector<16x1xf32>
    %2 = tpu.matmul %0, %1, %cst {dimension_numbers = #tpu.dot_dimension_numbers<[1], [0], [0], [1], [0, 0, 1, 1], [], []>} : vector<16x32xf32>, vector<32x1xf32>, vector<16x1xf32> -> vector<16x1xf32>
    %cst_3 = arith.constant 0.000000e+00 : f32
    %3 = vector.broadcast %cst_3 : f32 to vector<16x1xf32>
    %4 = arith.maximumf %2, %3 : vector<16x1xf32>
    %5 = math.absf %2 : vector<16x1xf32>
    %cst_4 = arith.constant 0.000000e+00 : f32
    %6 = vector.broadcast %cst_4 : f32 to vector<16x1xf32>
    %7 = arith.subf %6, %5 : vector<16x1xf32>
    %8 = math.exp %7 : vector<16x1xf32>
    %9 = math.log1p %8 : vector<16x1xf32>
    %10 = arith.addf %4, %9 : vector<16x1xf32>
    %cst_5 = arith.constant 0.000000e+00 : f32
    %11 = vector.broadcast %cst_5 : f32 to vector<16x1xf32>
    %12 = arith.subf %11, %10 : vector<16x1xf32>
    %13 = arith.subf %2, %10 : vector<16x1xf32>
    %14 = tpu.concatenate %12, %13 in 1 : vector<16x1xf32>, vector<16x1xf32> -> vector<16x2xf32>
    %c0_6 = arith.constant 0 : index
    %c0_7 = arith.constant 0 : index
    %15 = vector.load %arg3[%c0_6, %c0_7] : memref<16x2xf32, #tpu.memory_space<vmem>>, vector<16x2xf32>
    tpu.vector_store %arg3[%c0_6, %c0_7], %14 {strides = array<i32>} : memref<16x2xf32, #tpu.memory_space<vmem>>, vector<16x2xf32>,
    return
  }
  func.func @transform_0(%arg0: i32) -> (i32, i32) {
    %c0_i32 = arith.constant 0 : i32
    %c0_i32_0 = arith.constant 0 : i32
    return %arg0, %c0_i32 : i32, i32
  }
  func.func @transform_1(%arg0: i32) -> (i32, i32) {
    %c0_i32 = arith.constant 0 : i32
    %c0_i32_0 = arith.constant 0 : i32
    %c0_i32_1 = arith.constant 0 : i32
    return %c0_i32, %c0_i32_0 : i32, i32
  }
  func.func @transform_2(%arg0: i32) -> (i32, i32) {
    %c0_i32 = arith.constant 0 : i32
    %c0_i32_0 = arith.constant 0 : i32
    return %arg0, %c0_i32 : i32, i32
  }
}

</mosaic_0001>

<llo_original>
// kernel: tpu_custom_call.1
$region0: #{tpu_custom_call.1}
  #allocation0 [shape = 'u32[]', space=smem, size = 0x4, offset = 0x4, fixed_abs, tag = 'smem constant byte address 0x4 - core index']
  #allocation1 [shape = 'u32[144,128]{1,0:T(1,128)}', space=vmem, size = 0x12000, scoped, tag = 'internal scratch']
  %s0 = inlined_call_operand.vmem [shape: f32[16,32], index: 0, kind: input, shape index: {}]
  %s1 = inlined_call_operand.vmem [shape: f32[32,1], index: 1, kind: input, shape index: {}]
  %s2 = inlined_call_operand.vmem [shape: f32[16,2], index: 2, kind: output, shape index: {}]
  %s3 = sld [smem:[#allocation0]]
  $region18: #{tpu_custom_call.1} parent=0
    _
  %s5 = ssub.s32 1, %s3
  %s6 = scalar_select 0, %s5, %s3
  // Predicated region
  $region2: #{tpu_custom_call.1} parent=0 // pred_check
    _
  $region3: #{tpu_custom_call.1} parent=0 // pred_check_branch
    %8 = sbr.rel (0) target = $region5
  $region4: #{tpu_custom_call.1} parent=0 // pred_region
    _
  $region5: #{tpu_custom_call.1} parent=0 // pred_fallthru
    _
  // Predicated region
  $region6: #{tpu_custom_call.1} parent=0 // pred_check
    _
  $region7: #{tpu_custom_call.1} parent=0 // pred_check_branch
    %10 = sbr.rel (0) target = $region9
  $region8: #{tpu_custom_call.1} parent=0 // pred_region
    _
  $region9: #{tpu_custom_call.1} parent=0 // pred_fallthru
    _
  %v11 = vld [vmem:[%s0] sm:$0xff]
  %v12 = vld [vmem:[%s0 + $0x8] sm:$0xff]
  %v13 = vld [vmem:[%s1] sm:$0xff]
  %v14 = vld [vmem:[%s1 + $0x8] sm:$0xff]
  %v15 = vld [vmem:[%s1 + $0x10] sm:$0xff]
  %v16 = vld [vmem:[%s1 + $0x18] sm:$0xff]
  %vm17 = vcmask 261120
  %v19 = vsel %vm17, %v11, 0
  %v22 = vsel %vm17, %v12, 0
  %24 = vmatprep.subr.mxu0 0.0
  %25 = vmatpush1.msra.mxu0 0.0
  %26 = vmatprep.subr.mxu0 0.0
  %27 = vmatpush1.msra.mxu0 0.0
  %28 = vmatprep.subr.mxu0 0.0
  %29 = vmatpush1.msra.mxu0 0.0
  %30 = vmatprep.subr.mxu0 0.0
  %31 = vmatpush1.msra.mxu0 0.0
  %32 = vmatprep.subr.mxu0 0.0
  %33 = vmatpush1.msra.mxu0 0.0
  %34 = vmatprep.subr.mxu0 0.0
  %35 = vmatpush1.msra.mxu0 0.0
  %36 = vmatprep.subr.mxu0 0.0
  %37 = vmatpush1.msra.mxu0 0.0
  %38 = vmatprep.subr.mxu0 0.0
  %39 = vmatpush1.msra.mxu0 0.0
  %40 = vmatprep.subr.mxu0 0.0
  %41 = vmatpush1.msra.mxu0 0.0
  %42 = vmatprep.subr.mxu0 0.0
  %43 = vmatpush1.msra.mxu0 0.0
  %44 = vmatprep.subr.mxu0 0.0
  %45 = vmatpush1.msra.mxu0 0.0
  %46 = vmatprep.subr.mxu0 0.0
  %47 = vmatpush1.msra.mxu0 0.0
  %48 = vmatprep.subr.mxu0 0.0
  %49 = vmatpush1.msra.mxu0 %v16
  %50 = vmatprep.subr.mxu0 0.0
  %51 = vmatpush1.msra.mxu0 %v15
  %52 = vmatprep.subr.mxu0 0.0
  %53 = vmatpush1.msra.mxu0 %v14
  %54 = vmatprep.subr.mxu0 0.0
  %55 = vmatpush1.msra.mxu0 %v13
  %56 = vmatprep.subr.mxu0 0.0
  %57 = vmatpush2.msra.mxu0 0.0
  %58 = vmatprep.subr.mxu0 0.0
  %59 = vmatpush2.msra.mxu0 0.0
  %60 = vmatprep.subr.mxu0 0.0
  %61 = vmatpush2.msra.mxu0 0.0
  %62 = vmatprep.subr.mxu0 0.0
  %63 = vmatpush2.msra.mxu0 0.0
  %64 = vmatprep.subr.mxu0 0.0
  %65 = vmatpush2.msra.mxu0 0.0
  %66 = vmatprep.subr.mxu0 0.0
  %67 = vmatpush2.msra.mxu0 0.0
  %68 = vmatprep.subr.mxu0 0.0
  %69 = vmatpush2.msra.mxu0 0.0
  %70 = vmatprep.subr.mxu0 0.0
  %71 = vmatpush2.msra.mxu0 0.0
  %72 = vmatprep.subr.mxu0 0.0
  %73 = vmatpush2.msra.mxu0 0.0
  %74 = vmatprep.subr.mxu0 0.0
  %75 = vmatpush2.msra.mxu0 0.0
  %76 = vmatprep.subr.mxu0 0.0
  %77 = vmatpush2.msra.mxu0 0.0
  %78 = vmatprep.subr.mxu0 0.0
  %79 = vmatpush2.msra.mxu0 0.0
  %80 = vmatprep.subr.mxu0 0.0
  %81 = vmatpush2.msra.mxu0 0.0
  %82 = vmatprep.subr.mxu0 0.0
  %83 = vmatpush2.msra.mxu0 0.0
  %84 = vmatprep.subr.mxu0 0.0
  %85 = vmatpush2.msra.mxu0 0.0
  %86 = vmatprep.subr.mxu0 0.0
  %87 = vmatpush2.msra.mxu0 0.0
  %88 = vmatprep.mubr.f32.mxu0 0.0
  %89 = vmatmul.mubr.f32.gmra.mxu0 %v19
  %v90 = vpop.f32.mrf.mxu0
  %v91 = vadd.f32 0.0, %v90
  %v92 = vpop.f32.mrf.mxu0
  %93 = vmatprep.mubr.f32.mxu0 0.0
  %94 = vmatmul.mubr.f32.gmra.mxu0 %v22
  %v95 = vpop.f32.mrf.mxu0
  %v96 = vadd.f32 0.0, %v95
  %v97 = vpop.f32.mrf.mxu0
  %98 = vdwg.mxu0
  %v99 = vmax.f32 %v91, 0.0
  %v100 = vmax.f32 %v96, 0.0
  %v101 = vand.u32 2147483647, %v91
  %v102 = vand.u32 2147483647, %v96
  %v103 = vsub.f32 0.0, %v101
  %v104 = vsub.f32 0.0, %v102
  %v105 = vmul.f32 %v103, 1.442695
  %v106 = vpow.pop %v105
  %v107 = vmul.f32 %v104, 1.442695
  %v108 = vpow.pop %v107
  %v109 = vadd.f32 %v106, 1.0
  %v110 = vlog2.pop %v109
  %v111 = vmul.f32 %v110, 0.6931472
  %v112 = vmul.f32 -0.5, %v106
  %v113 = vadd.f32 %v112, 1.0
  %v114 = vmul.f32 %v113, %v106
  %v115 = vand.u32 2147483647, %v106
  %vm116 = vcmp.lt.f32.partialorder %v115, 0.0004427343
  %v117 = vsel %vm116, %v114, %v111
  %v118 = vadd.f32 %v108, 1.0
  %v119 = vlog2.pop %v118
  %v120 = vmul.f32 %v119, 0.6931472
  %v121 = vmul.f32 -0.5, %v108
  %v122 = vadd.f32 %v121, 1.0
  %v123 = vmul.f32 %v122, %v108
  %v124 = vand.u32 2147483647, %v108
  %vm125 = vcmp.lt.f32.partialorder %v124, 0.0004427343
  %v126 = vsel %vm125, %v123, %v120
  %v127 = vadd.f32 %v99, %v117
  %v128 = vadd.f32 %v100, %v126
  %v129 = vsub.f32 0.0, %v127
  %v130 = vsub.f32 0.0, %v128
  %v131 = vsub.f32 %v91, %v127
  %v132 = vsub.f32 %v96, %v128
  %135 = vrot.lane.b32.xlu0 %v131, 1
  %v136 = vpop.permute.xlu0 %135
  %137 = vrot.lane.b32.xlu0 %v132, 1
  %v138 = vpop.permute.xlu0 %137
  %vm141 = vcmask 7168
  %v142 = vsel %vm141, %v129, %v136
  %v143 = vsel %vm141, %v130, %v138
  %vm144 = vcmask 15360
  %145 = vst.msk [vmem:[%s2] sm:$0xff] %vm144, %v142
  %146 = vst.msk [vmem:[%s2 + $0x8] sm:$0xff] %vm144, %v143
  // Predicated region
  $region10: #{tpu_custom_call.1} parent=0 // pred_check
    _
  $region11: #{tpu_custom_call.1} parent=0 // pred_check_branch
    %148 = sbr.rel (0) target = $region13
  $region12: #{tpu_custom_call.1} parent=0 // pred_region
    _
  $region13: #{tpu_custom_call.1} parent=0 // pred_fallthru
    _
  // Predicated region
  $region14: #{tpu_custom_call.1} parent=0 // pred_check
    _
  $region15: #{tpu_custom_call.1} parent=0 // pred_check_branch
    %150 = sbr.rel (0) target = $region17
  $region16: #{tpu_custom_call.1} parent=0 // pred_region
    _
  $region17: #{tpu_custom_call.1} parent=0 // pred_fallthru
    _

</llo_original>
